<compile_context>
chip_gen: v7x
topology: tpu7x:2x2x1
jax: 0.10.0
libtpu: 0.0.40
codegen_flags: <defaults>
</compile_context>

<pallas_src>
import jax
import jax.numpy as jnp
from jax import lax
from jax.experimental import pallas as pl
from jax.experimental.pallas import tpu as pltpu

# ----------------------------------------------------------------------------
# Static network layout
# ----------------------------------------------------------------------------
DIMS = (5, 32, 64, 32, 16, 6)          # fc1 .. fc5
N_LAYERS = len(DIMS) - 1
LANE = 128
SUBLANE = 8
CHUNK = 256                            # in-kernel compute tile (lanes); 256-mult for v6e/v7x MXU
MAX_TB = 4096                          # DMA tile (lanes / grid step); amortizes per-step overhead


def _round_up(x, m):
    return (x + m - 1) // m * m


# Padded out-dims (sublane multiples) and row offsets inside the packed slab.
OUT_PAD = tuple(_round_up(d, SUBLANE) for d in DIMS[1:])       # (32, 64, 32, 16, 8)
_offs, _r = [], 0
for _p in OUT_PAD:
    _offs.append(_r)
    _r += _p
ROW_OFFS = tuple(_offs)                                        # (0, 32, 96, 128, 144)
SLAB_ROWS = _round_up(_r, 16)                                  # 160: native bf16 sublane pack
OUT_ROWS = OUT_PAD[-1]                                         # 8 (rows 6..7 are zero padding)


# ----------------------------------------------------------------------------
# Pallas kernel: fused 5-layer MLP forward pass
# ----------------------------------------------------------------------------
def _make_kernel(n_chunks, chunk):
    def kernel(x_ref, w_ref, b_ref, o_ref):
        # x_ref: [TB, 5]     f32 batch-major input tile (TB = n_chunks * chunk lanes)
        # w_ref: [160, 128]  bf16 packed weights; layer li at rows ROW_OFFS[li], cols [0:in_d)
        # b_ref: [160, 1]    f32 packed biases (column vectors, broadcast along lanes)
        # o_ref: [8, TB]     f32 feature-major output (rows 6..7 are zeros)

        # Hoist the small weight / bias slices out of the chunk loop: one
        # masked-lane relayout per grid step instead of one per compute chunk.
        ws, bs = [], []
        for li in range(N_LAYERS):
            r0, out_p, in_d = ROW_OFFS[li], OUT_PAD[li], DIMS[li]
            ws.append(w_ref[r0:r0 + out_p, 0:in_d])    # bf16 [out_p, in_d] (PyTorch layout)
            bs.append(b_ref[r0:r0 + out_p, :])         # f32  [out_p, 1]

        # Fully-unrolled chunk loop (static slices): decouples the large DMA tile
        # from a vreg-sized compute tile; largest live value is [64, chunk] f32.
        for c in range(n_chunks):
            lo, hi = c * chunk, (c + 1) * chunk
            xc = x_ref[lo:hi, :].astype(jnp.bfloat16)  # [chunk, 5]
            # Layer 1: trans-B matmul fuses the input transpose into the kernel
            # and yields feature-major activations [32, chunk].
            h = lax.dot_general(
                ws[0], xc,
                dimension_numbers=(((1,), (1,)), ((), ())),
                preferred_element_type=jnp.float32) + bs[0]
            h = 0.5 * jnp.tanh(0.5 * h) + 0.5          # sigmoid, single EUP push, f32 math
            for li in range(1, N_LAYERS):
                h = jnp.dot(ws[li], h.astype(jnp.bfloat16),
                            preferred_element_type=jnp.float32) + bs[li]
                if li < N_LAYERS - 1:
                    h = 0.5 * jnp.tanh(0.5 * h) + 0.5
            o_ref[:, lo:hi] = h.astype(o_ref.dtype)    # [8, chunk] lane-dense store

    return kernel


# ----------------------------------------------------------------------------
# Host-side packing of parameters into two resident VMEM slabs
# ----------------------------------------------------------------------------
def pack_params(params):
    """params: list of (W [out,in], b [out]) in PyTorch layout -> packed slabs."""
    w_slab = jnp.zeros((SLAB_ROWS, LANE), jnp.bfloat16)
    b_slab = jnp.zeros((SLAB_ROWS, 1), jnp.float32)
    for (w, b), r0 in zip(params, ROW_OFFS):
        out_d, in_d = w.shape
        w_slab = w_slab.at[r0:r0 + out_d, :in_d].set(w.astype(jnp.bfloat16))
        b_slab = b_slab.at[r0:r0 + out_d, 0].set(b.astype(jnp.float32))
    return w_slab, b_slab


# ----------------------------------------------------------------------------
# Wrapper
# ----------------------------------------------------------------------------
def model_3round_forward(x, params, *, max_tb=MAX_TB, chunk=CHUNK):
    """x: [B, 5].  params: list of (W [out,in], b [out]) per layer (PyTorch layout)."""
    B = x.shape[0]
    in_dim, out_dim = DIMS[0], DIMS[-1]

    # Batch tiling: large DMA tiles; when more than one block is needed keep the
    # block count even so v7x's two TensorCores both get work.
    b_ceil = _round_up(max(B, 1), chunk)
    n_blocks = max(1, pl.cdiv(b_ceil, max_tb))
    if n_blocks > 1 and n_blocks % 2:
        n_blocks += 1
    tb = _round_up(pl.cdiv(b_ceil, n_blocks), chunk)
    b_pad = n_blocks * tb
    n_chunks = tb // chunk

    # Pad-only guard for the tail block (no transpose of x; padded rows compute
    # harmless values that are sliced off).
    x_pad = x.astype(jnp.float32)
    if b_pad != B:
        x_pad = jnp.pad(x_pad, ((0, b_pad - B), (0, 0)))

    w_slab, b_slab = pack_params(params)

    grid_spec = pltpu.PrefetchScalarGridSpec(
        num_scalar_prefetch=0,
        grid=(n_blocks,),
        in_specs=[
            pl.BlockSpec((tb, in_dim), lambda i: (i, 0)),        # x tile (pipelined)
            pl.BlockSpec((SLAB_ROWS, LANE), lambda i: (0, 0)),   # bf16 weights (resident)
            pl.BlockSpec((SLAB_ROWS, 1), lambda i: (0, 0)),      # f32 biases (resident)
        ],
        out_specs=pl.BlockSpec((OUT_ROWS, tb), lambda i: (0, i)),
    )

    out_fm = pl.pallas_call(
        _make_kernel(n_chunks, chunk),
        out_shape=jax.ShapeDtypeStruct((OUT_ROWS, b_pad), jnp.float32),
        grid_spec=grid_spec,
        compiler_params=pltpu.CompilerParams(
            dimension_semantics=("parallel",),        # shard batch tiles across TCs (v7x)
            vmem_limit_bytes=16 * 1024 * 1024,        # ~4.5 MB max per-step footprint
        ),
    )(x_pad, w_slab, b_slab)

    return out_fm[:out_dim, :B].T                      # back to [B, 6]


# ----------------------------------------------------------------------------
# Deterministic parameter init (PyTorch nn.Linear default: U(-1/sqrt(in), 1/sqrt(in)))
# Weights kept in PyTorch-native [out, in] layout.
# ----------------------------------------------------------------------------
def init_params(key):
    params = []
    for i in range(N_LAYERS):
        fan_in, fan_out = DIMS[i], DIMS[i + 1]
        key, kw, kb = jax.random.split(key, 3)
        bound = 1.0 / float(fan_in) ** 0.5
        w = jax.random.uniform(kw, (fan_out, fan_in), jnp.float32, -bound, bound)
        b = jax.random.uniform(kb, (fan_out,), jnp.float32, -bound, bound)
        params.append((w, b))
    return params


# ----------------------------------------------------------------------------
# Pure-JAX f32 reference for a sanity check
# ----------------------------------------------------------------------------
def reference_forward(x, params):
    h = x
    for i, (w, b) in enumerate(params):
        h = h @ w.T + b
        if i < len(params) - 1:
            h = jax.nn.sigmoid(h)
    return h


if __name__ == "__main__":
    key = jax.random.PRNGKey(0)
    key, kx = jax.random.split(key)

    B = 8
    x = jax.random.normal(kx, (B, DIMS[0]), jnp.float32)
    params = init_params(key)

    out = model_3round_forward(x, params)
    out = jax.block_until_ready(out)

    ref = reference_forward(x, params)
    assert out.shape == (B, DIMS[-1]), out.shape
    # bf16 MXU operands (f32 accumulation, f32 exact tanh-sigmoid) -> ~1e-3
    # typical error; 2e-2 bound is comfortable.
    err = float(jnp.max(jnp.abs(out - ref)))
    assert jnp.allclose(out, ref, atol=2e-2, rtol=2e-2), err

    print("KERNEL_OK")
</pallas_src>

<mosaic_0001>
module attributes {stable_mosaic.version = 11 : i64} {
  func.func @kernel(%arg0: i32, %arg1: memref<256x5xf32, #tpu.memory_space<vmem>>, %arg2: memref<160x128xbf16, #tpu.memory_space<vmem>>, %arg3: memref<160x1xf32, #tpu.memory_space<vmem>>, %arg4: memref<8x256xf32, #tpu.memory_space<vmem>>) attributes {dimension_semantics = [#tpu.dimension_semantics<parallel>], iteration_bounds = array<i64: 1>, scalar_prefetch = 0 : i64, scratch_operands = 0 : i64, tpu.core_type = #tpu.core_type<tc>, window_params = [{transform_indices = @transform_0, window_bounds = array<i64: 256, 5>}, {pipeline_mode = #tpu.pipeline_mode<synchronous>, transform_indices = @transform_1, window_bounds = array<i64: 160, 128>}, {pipeline_mode = #tpu.pipeline_mode<synchronous>, transform_indices = @transform_2, window_bounds = array<i64: 160, 1>}, {transform_indices = @transform_3, window_bounds = array<i64: 8, 256>}]} {
    %c0 = arith.constant 0 : index
    %c0_0 = arith.constant 0 : index
    %0 = vector.load %arg2[%c0, %c0_0] : memref<160x128xbf16, #tpu.memory_space<vmem>>, vector<32x5xbf16>
    %c0_1 = arith.constant 0 : index
    %c0_2 = arith.constant 0 : index
    %1 = vector.load %arg3[%c0_1, %c0_2] : memref<160x1xf32, #tpu.memory_space<vmem>>, vector<32x1xf32>
    %c32 = arith.constant 32 : index
    %c0_3 = arith.constant 0 : index
    %2 = vector.load %arg2[%c32, %c0_3] : memref<160x128xbf16, #tpu.memory_space<vmem>>, vector<64x32xbf16>
    %c32_4 = arith.constant 32 : index
    %c0_5 = arith.constant 0 : index
    %3 = vector.load %arg3[%c32_4, %c0_5] : memref<160x1xf32, #tpu.memory_space<vmem>>, vector<64x1xf32>
    %c96 = arith.constant 96 : index
    %c0_6 = arith.constant 0 : index
    %4 = vector.load %arg2[%c96, %c0_6] : memref<160x128xbf16, #tpu.memory_space<vmem>>, vector<32x64xbf16>
    %c96_7 = arith.constant 96 : index
    %c0_8 = arith.constant 0 : index
    %5 = vector.load %arg3[%c96_7, %c0_8] : memref<160x1xf32, #tpu.memory_space<vmem>>, vector<32x1xf32>
    %c128 = arith.constant 128 : index
    %c0_9 = arith.constant 0 : index
    %6 = vector.load %arg2[%c128, %c0_9] : memref<160x128xbf16, #tpu.memory_space<vmem>>, vector<16x32xbf16>
    %c128_10 = arith.constant 128 : index
    %c0_11 = arith.constant 0 : index
    %7 = vector.load %arg3[%c128_10, %c0_11] : memref<160x1xf32, #tpu.memory_space<vmem>>, vector<16x1xf32>
    %c144 = arith.constant 144 : index
    %c0_12 = arith.constant 0 : index
    %8 = vector.load %arg2[%c144, %c0_12] : memref<160x128xbf16, #tpu.memory_space<vmem>>, vector<8x16xbf16>
    %c144_13 = arith.constant 144 : index
    %c0_14 = arith.constant 0 : index
    %9 = vector.load %arg3[%c144_13, %c0_14] : memref<160x1xf32, #tpu.memory_space<vmem>>, vector<8x1xf32>
    %c0_15 = arith.constant 0 : index
    %c0_16 = arith.constant 0 : index
    %10 = vector.load %arg1[%c0_15, %c0_16] : memref<256x5xf32, #tpu.memory_space<vmem>>, vector<256x5xf32>
    %11 = arith.truncf %10 : vector<256x5xf32> to vector<256x5xbf16>
    %cst = arith.constant dense<0.000000e+00> : vector<32x256xf32>
    %12 = tpu.matmul %0, %11, %cst {dimension_numbers = #tpu.dot_dimension_numbers<[1], [1], [0], [0], [0, 0, 1, 0], [], []>} : vector<32x5xbf16>, vector<256x5xbf16>, vector<32x256xf32> -> vector<32x256xf32>
    %13 = vector.broadcast %1 : vector<32x1xf32> to vector<32x256xf32>
    %14 = arith.addf %12, %13 : vector<32x256xf32>
    %cst_17 = arith.constant 5.000000e-01 : f32
    %15 = vector.broadcast %cst_17 : f32 to vector<32x256xf32>
    %16 = arith.mulf %15, %14 : vector<32x256xf32>
    %17 = math.tanh %16 : vector<32x256xf32>
    %cst_18 = arith.constant 5.000000e-01 : f32
    %18 = vector.broadcast %cst_18 : f32 to vector<32x256xf32>
    %19 = arith.mulf %18, %17 : vector<32x256xf32>
    %cst_19 = arith.constant 5.000000e-01 : f32
    %20 = vector.broadcast %cst_19 : f32 to vector<32x256xf32>
    %21 = arith.addf %19, %20 : vector<32x256xf32>
    %22 = arith.truncf %21 : vector<32x256xf32> to vector<32x256xbf16>
    %cst_20 = arith.constant dense<0.000000e+00> : vector<64x256xf32>
    %23 = tpu.matmul %2, %22, %cst_20 {dimension_numbers = #tpu.dot_dimension_numbers<[1], [0], [0], [1], [0, 0, 1, 1], [], []>} : vector<64x32xbf16>, vector<32x256xbf16>, vector<64x256xf32> -> vector<64x256xf32>
    %24 = vector.broadcast %3 : vector<64x1xf32> to vector<64x256xf32>
    %25 = arith.addf %23, %24 : vector<64x256xf32>
    %cst_21 = arith.constant 5.000000e-01 : f32
    %26 = vector.broadcast %cst_21 : f32 to vector<64x256xf32>
    %27 = arith.mulf %26, %25 : vector<64x256xf32>
    %28 = math.tanh %27 : vector<64x256xf32>
    %cst_22 = arith.constant 5.000000e-01 : f32
    %29 = vector.broadcast %cst_22 : f32 to vector<64x256xf32>
    %30 = arith.mulf %29, %28 : vector<64x256xf32>
    %cst_23 = arith.constant 5.000000e-01 : f32
    %31 = vector.broadcast %cst_23 : f32 to vector<64x256xf32>
    %32 = arith.addf %30, %31 : vector<64x256xf32>
    %33 = arith.truncf %32 : vector<64x256xf32> to vector<64x256xbf16>
    %cst_24 = arith.constant dense<0.000000e+00> : vector<32x256xf32>
    %34 = tpu.matmul %4, %33, %cst_24 {dimension_numbers = #tpu.dot_dimension_numbers<[1], [0], [0], [1], [0, 0, 1, 1], [], []>} : vector<32x64xbf16>, vector<64x256xbf16>, vector<32x256xf32> -> vector<32x256xf32>
    %35 = vector.broadcast %5 : vector<32x1xf32> to vector<32x256xf32>
    %36 = arith.addf %34, %35 : vector<32x256xf32>
    %cst_25 = arith.constant 5.000000e-01 : f32
    %37 = vector.broadcast %cst_25 : f32 to vector<32x256xf32>
    %38 = arith.mulf %37, %36 : vector<32x256xf32>
    %39 = math.tanh %38 : vector<32x256xf32>
    %cst_26 = arith.constant 5.000000e-01 : f32
    %40 = vector.broadcast %cst_26 : f32 to vector<32x256xf32>
    %41 = arith.mulf %40, %39 : vector<32x256xf32>
    %cst_27 = arith.constant 5.000000e-01 : f32
    %42 = vector.broadcast %cst_27 : f32 to vector<32x256xf32>
    %43 = arith.addf %41, %42 : vector<32x256xf32>
    %44 = arith.truncf %43 : vector<32x256xf32> to vector<32x256xbf16>
    %cst_28 = arith.constant dense<0.000000e+00> : vector<16x256xf32>
    %45 = tpu.matmul %6, %44, %cst_28 {dimension_numbers = #tpu.dot_dimension_numbers<[1], [0], [0], [1], [0, 0, 1, 1], [], []>} : vector<16x32xbf16>, vector<32x256xbf16>, vector<16x256xf32> -> vector<16x256xf32>
    %46 = vector.broadcast %7 : vector<16x1xf32> to vector<16x256xf32>
    %47 = arith.addf %45, %46 : vector<16x256xf32>
    %cst_29 = arith.constant 5.000000e-01 : f32
    %48 = vector.broadcast %cst_29 : f32 to vector<16x256xf32>
    %49 = arith.mulf %48, %47 : vector<16x256xf32>
    %50 = math.tanh %49 : vector<16x256xf32>
    %cst_30 = arith.constant 5.000000e-01 : f32
    %51 = vector.broadcast %cst_30 : f32 to vector<16x256xf32>
    %52 = arith.mulf %51, %50 : vector<16x256xf32>
    %cst_31 = arith.constant 5.000000e-01 : f32
    %53 = vector.broadcast %cst_31 : f32 to vector<16x256xf32>
    %54 = arith.addf %52, %53 : vector<16x256xf32>
    %55 = arith.truncf %54 : vector<16x256xf32> to vector<16x256xbf16>
    %cst_32 = arith.constant dense<0.000000e+00> : vector<8x256xf32>
    %56 = tpu.matmul %8, %55, %cst_32 {dimension_numbers = #tpu.dot_dimension_numbers<[1], [0], [0], [1], [0, 0, 1, 1], [], []>} : vector<8x16xbf16>, vector<16x256xbf16>, vector<8x256xf32> -> vector<8x256xf32>
    %57 = vector.broadcast %9 : vector<8x1xf32> to vector<8x256xf32>
    %58 = arith.addf %56, %57 : vector<8x256xf32>
    %c0_33 = arith.constant 0 : index
    %c0_34 = arith.constant 0 : index
    %59 = vector.load %arg4[%c0_33, %c0_34] : memref<8x256xf32, #tpu.memory_space<vmem>>, vector<8x256xf32>
    tpu.vector_store %arg4[%c0_33, %c0_34], %58 {strides = array<i32>} : memref<8x256xf32, #tpu.memory_space<vmem>>, vector<8x256xf32>,
    return
  }
  func.func @transform_0(%arg0: i32) -> (i32, i32) {
    %c0_i32 = arith.constant 0 : i32
    %c0_i32_0 = arith.constant 0 : i32
    return %arg0, %c0_i32 : i32, i32
  }
  func.func @transform_1(%arg0: i32) -> (i32, i32) {
    %c0_i32 = arith.constant 0 : i32
    %c0_i32_0 = arith.constant 0 : i32
    %c0_i32_1 = arith.constant 0 : i32
    return %c0_i32, %c0_i32_0 : i32, i32
  }
  func.func @transform_2(%arg0: i32) -> (i32, i32) {
    %c0_i32 = arith.constant 0 : i32
    %c0_i32_0 = arith.constant 0 : i32
    %c0_i32_1 = arith.constant 0 : i32
    return %c0_i32, %c0_i32_0 : i32, i32
  }
  func.func @transform_3(%arg0: i32) -> (i32, i32) {
    %c0_i32 = arith.constant 0 : i32
    %c0_i32_0 = arith.constant 0 : i32
    return %c0_i32, %arg0 : i32, i32
  }
}

</mosaic_0001>

<llo_original>
// kernel: tpu_custom_call.1
$region0: #{tpu_custom_call.1}
  #allocation0 [shape = 'u32[]', space=smem, size = 0x4, offset = 0x4, fixed_abs, tag = 'smem constant byte address 0x4 - core index']
  #allocation1 [shape = 'u32[144,128]{1,0:T(1,128)}', space=vmem, size = 0x12000, scoped, tag = 'internal scratch']
  %s0 = inlined_call_operand.vmem [shape: f32[256,5], index: 0, kind: input, shape index: {}]
  %s1 = inlined_call_operand.vmem [shape: bf16[160,128], index: 1, kind: input, shape index: {}]
  %s2 = inlined_call_operand.vmem [shape: f32[160,1], index: 2, kind: input, shape index: {}]
  %s3 = inlined_call_operand.hbm [shape: f32[8,256], index: 3, kind: output, shape index: {}]
  %s4 = sld [smem:[#allocation0]]
  $region22: #{tpu_custom_call.1} parent=0
    _
  %s6 = ssub.s32 1, %s4
  %s7 = scalar_select 0, %s6, %s4
  $region1: #{tpu_custom_call.1} parent=0
    #allocation2 [shape = 'u8[8192]{0}', space=vmem, size = 0x2000, scoped, tag = 'output window, operand 0, single buffered']
    #allocation3 [shape = 's32[1]{0}', space=sflag, size = 0x4, scoped, tag = 'scoped memory for tpu_custom_call.1']
    %8 = vsyncpa [#allocation3], 0
    // Predicated region
    $region2: #{tpu_custom_call.1} parent=1 // pred_check
      _
    $region3: #{tpu_custom_call.1} parent=1 // pred_check_branch
      %10 = sbr.rel (0) target = $region5
    $region4: #{tpu_custom_call.1} parent=1 // pred_region
      _
    $region5: #{tpu_custom_call.1} parent=1 // pred_fallthru
      _
    // Predicated region
    $region6: #{tpu_custom_call.1} parent=1 // pred_check
      _
    $region7: #{tpu_custom_call.1} parent=1 // pred_check_branch
      %12 = sbr.rel (0) target = $region9
    $region8: #{tpu_custom_call.1} parent=1 // pred_region
      _
    $region9: #{tpu_custom_call.1} parent=1 // pred_fallthru
      _
    // Predicated region
    $region10: #{tpu_custom_call.1} parent=1 // pred_check
      _
    $region11: #{tpu_custom_call.1} parent=1 // pred_check_branch
      %14 = sbr.rel (0) target = $region13
    $region12: #{tpu_custom_call.1} parent=1 // pred_region
      _
    $region13: #{tpu_custom_call.1} parent=1 // pred_fallthru
      _
    %v16 = vld [vmem:[%s1] sm:$0xf]
    %v17 = vld [vmem:[%s1 + $0x4] sm:$0xf]
    %v18 = vld [vmem:[%s1 + $0x8] sm:$0xf]
    %v19 = vld [vmem:[%s1 + $0xc] sm:$0xf]
    %v20 = vld [vmem:[%s2] sm:$0xff]
    %v21 = vld [vmem:[%s2 + $0x8] sm:$0xff]
    %v22 = vld [vmem:[%s2 + $0x10] sm:$0xff]
    %v23 = vld [vmem:[%s2 + $0x18] sm:$0xff]
    %v24 = vld [vmem:[%s1 + $0x10] sm:$0xf]
    %v25 = vld [vmem:[%s1 + $0x14] sm:$0xf]
    %v26 = vld [vmem:[%s1 + $0x18] sm:$0xf]
    %v27 = vld [vmem:[%s1 + $0x1c] sm:$0xf]
    %v28 = vld [vmem:[%s1 + $0x20] sm:$0xf]
    %v29 = vld [vmem:[%s1 + $0x24] sm:$0xf]
    %v30 = vld [vmem:[%s1 + $0x28] sm:$0xf]
    %v31 = vld [vmem:[%s1 + $0x2c] sm:$0xf]
    %v32 = vld [vmem:[%s2 + $0x20] sm:$0xff]
    %v33 = vld [vmem:[%s2 + $0x28] sm:$0xff]
    %v34 = vld [vmem:[%s2 + $0x30] sm:$0xff]
    %v35 = vld [vmem:[%s2 + $0x38] sm:$0xff]
    %v36 = vld [vmem:[%s2 + $0x40] sm:$0xff]
    %v37 = vld [vmem:[%s2 + $0x48] sm:$0xff]
    %v38 = vld [vmem:[%s2 + $0x50] sm:$0xff]
    %v39 = vld [vmem:[%s2 + $0x58] sm:$0xff]
    %v40 = vld [vmem:[%s1 + $0x30] sm:$0xf]
    %v41 = vld [vmem:[%s1 + $0x34] sm:$0xf]
    %v42 = vld [vmem:[%s1 + $0x38] sm:$0xf]
    %v43 = vld [vmem:[%s1 + $0x3c] sm:$0xf]
    %v44 = vld [vmem:[%s2 + $0x60] sm:$0xff]
    %v45 = vld [vmem:[%s2 + $0x68] sm:$0xff]
    %v46 = vld [vmem:[%s2 + $0x70] sm:$0xff]
    %v47 = vld [vmem:[%s2 + $0x78] sm:$0xff]
    %v48 = vld [vmem:[%s1 + $0x40] sm:$0xf]
    %v49 = vld [vmem:[%s1 + $0x44] sm:$0xf]
    %v50 = vld [vmem:[%s2 + $0x80] sm:$0xff]
    %v51 = vld [vmem:[%s2 + $0x88] sm:$0xff]
    %v52 = vld [vmem:[%s1 + $0x48] sm:$0xf]
    %v53 = vld [vmem:[%s2 + $0x90] sm:$0xff]
    %v54 = vld [vmem:[%s0] sm:$0xff]
    %v55 = vld [vmem:[%s0 + $0x8] sm:$0xff]
    %v56 = vld [vmem:[%s0 + $0x10] sm:$0xff]
    %v57 = vld [vmem:[%s0 + $0x18] sm:$0xff]
    %v58 = vld [vmem:[%s0 + $0x20] sm:$0xff]
    %v59 = vld [vmem:[%s0 + $0x28] sm:$0xff]
    %v60 = vld [vmem:[%s0 + $0x30] sm:$0xff]
    %v61 = vld [vmem:[%s0 + $0x38] sm:$0xff]
    %v62 = vld [vmem:[%s0 + $0x40] sm:$0xff]
    %v63 = vld [vmem:[%s0 + $0x48] sm:$0xff]
    %v64 = vld [vmem:[%s0 + $0x50] sm:$0xff]
    %v65 = vld [vmem:[%s0 + $0x58] sm:$0xff]
    %v66 = vld [vmem:[%s0 + $0x60] sm:$0xff]
    %v67 = vld [vmem:[%s0 + $0x68] sm:$0xff]
    %v68 = vld [vmem:[%s0 + $0x70] sm:$0xff]
    %v69 = vld [vmem:[%s0 + $0x78] sm:$0xff]
    %v70 = vld [vmem:[%s0 + $0x80] sm:$0xff]
    %v71 = vld [vmem:[%s0 + $0x88] sm:$0xff]
    %v72 = vld [vmem:[%s0 + $0x90] sm:$0xff]
    %v73 = vld [vmem:[%s0 + $0x98] sm:$0xff]
    %v74 = vld [vmem:[%s0 + $0xa0] sm:$0xff]
    %v75 = vld [vmem:[%s0 + $0xa8] sm:$0xff]
    %v76 = vld [vmem:[%s0 + $0xb0] sm:$0xff]
    %v77 = vld [vmem:[%s0 + $0xb8] sm:$0xff]
    %v78 = vld [vmem:[%s0 + $0xc0] sm:$0xff]
    %v79 = vld [vmem:[%s0 + $0xc8] sm:$0xff]
    %v80 = vld [vmem:[%s0 + $0xd0] sm:$0xff]
    %v81 = vld [vmem:[%s0 + $0xd8] sm:$0xff]
    %v82 = vld [vmem:[%s0 + $0xe0] sm:$0xff]
    %v83 = vld [vmem:[%s0 + $0xe8] sm:$0xff]
    %v84 = vld [vmem:[%s0 + $0xf0] sm:$0xff]
    %v85 = vld [vmem:[%s0 + $0xf8] sm:$0xff]
    %v86 = vpack.c.bf16 %v55, %v54
    %v87 = vpack.c.bf16 %v57, %v56
    %v88 = vpack.c.bf16 %v59, %v58
    %v89 = vpack.c.bf16 %v61, %v60
    %v90 = vpack.c.bf16 %v63, %v62
    %v91 = vpack.c.bf16 %v65, %v64
    %v92 = vpack.c.bf16 %v67, %v66
    %v93 = vpack.c.bf16 %v69, %v68
    %v94 = vpack.c.bf16 %v71, %v70
    %v95 = vpack.c.bf16 %v73, %v72
    %v96 = vpack.c.bf16 %v75, %v74
    %v97 = vpack.c.bf16 %v77, %v76
    %v98 = vpack.c.bf16 %v79, %v78
    %v99 = vpack.c.bf16 %v81, %v80
    %v100 = vpack.c.bf16 %v83, %v82
    %v101 = vpack.c.bf16 %v85, %v84
    %103 = vset.pattern.permute.xlu0 0
    %104 = vperm.xlu0 %103, %v20
    %v105 = vpop.permute.xlu0 %104
    %108 = vset.pattern.permute.xlu0 0
    %109 = vperm.xlu0 %108, %v21
    %v110 = vpop.permute.xlu0 %109
    %113 = vset.pattern.permute.xlu0 0
    %114 = vperm.xlu0 %113, %v22
    %v115 = vpop.permute.xlu0 %114
    %118 = vset.pattern.permute.xlu0 0
    %119 = vperm.xlu0 %118, %v23
    %v120 = vpop.permute.xlu0 %119
    %v126 = vunpack.c.l.b16 %v16
    %v127 = vunpack.c.l.b16 %v17
    %v128 = vunpack.c.l.b16 %v18
    %v129 = vunpack.c.l.b16 %v19
    %v130 = vpack.c.b16 %v127, %v126
    %v131 = vpack.c.b16 %v129, %v128
    %vm132 = vcmask 39936
    %v134 = vsel %vm132, %v130, 0
    %v137 = vsel %vm132, %v131, 0
    %v140 = vsel %vm132, %v86, 0
    %v143 = vsel %vm132, %v87, 0
    %v146 = vsel %vm132, %v88, 0
    %v149 = vsel %vm132, %v89, 0
    %v152 = vsel %vm132, %v90, 0
    %v155 = vsel %vm132, %v91, 0
    %v158 = vsel %vm132, %v92, 0
    %v161 = vsel %vm132, %v93, 0
    %v164 = vsel %vm132, %v94, 0
    %v167 = vsel %vm132, %v95, 0
    %v170 = vsel %vm132, %v96, 0
    %v173 = vsel %vm132, %v97, 0
    %v176 = vsel %vm132, %v98, 0
    %v179 = vsel %vm132, %v99, 0
    %v182 = vsel %vm132, %v100, 0
    %v185 = vsel %vm132, %v101, 0
    %187 = vmatprep.subr.bf16.mxu0 0
    %188 = vmatpush1.bf16.xpose.msra.mxu0 %v140
    %189 = vmatprep.subr.bf16.mxu0 0
    %190 = vmatpush1.bf16.xpose.msra.mxu0 %v143
    %191 = vmatprep.subr.bf16.mxu0 0
    %192 = vmatpush1.bf16.xpose.msra.mxu0 %v146
    %193 = vmatprep.subr.bf16.mxu0 0
    %194 = vmatpush1.bf16.xpose.msra.mxu0 %v149
    %195 = vmatprep.subr.bf16.mxu0 0
    %196 = vmatpush1.bf16.xpose.msra.mxu0 %v152
    %197 = vmatprep.subr.bf16.mxu0 0
    %198 = vmatpush1.bf16.xpose.msra.mxu0 %v155
    %199 = vmatprep.subr.bf16.mxu0 0
    %200 = vmatpush1.bf16.xpose.msra.mxu0 %v158
    %201 = vmatprep.subr.bf16.mxu0 0
    %202 = vmatpush1.bf16.xpose.msra.mxu0 %v161
    %203 = vmatprep.subr.bf16.mxu0 0
    %204 = vmatpush1.bf16.xpose.msra.mxu0 %v164
    %205 = vmatprep.subr.bf16.mxu0 0
    %206 = vmatpush1.bf16.xpose.msra.mxu0 %v167
    %207 = vmatprep.subr.bf16.mxu0 0
    %208 = vmatpush1.bf16.xpose.msra.mxu0 %v170
    %209 = vmatprep.subr.bf16.mxu0 0
    %210 = vmatpush1.bf16.xpose.msra.mxu0 %v173
    %211 = vmatprep.subr.bf16.mxu0 0
    %212 = vmatpush1.bf16.xpose.msra.mxu0 %v176
    %213 = vmatprep.subr.bf16.mxu0 0
    %214 = vmatpush1.bf16.xpose.msra.mxu0 %v179
    %215 = vmatprep.subr.bf16.mxu0 0
    %216 = vmatpush1.bf16.xpose.msra.mxu0 %v182
    %217 = vmatprep.subr.bf16.mxu0 0
    %218 = vmatpush1.bf16.xpose.msra.mxu0 %v185
    %219 = vmatprep.mubr.bf16.mxu0 0
    %220 = vmatmul.mubr.bf16.gmra.mrb[0].mxu0 %v134
    %v221 = vpop.f32.mrb[0].mxu0
    %v222 = vadd.f32 %v105, %v221
    %v223 = vpop.f32.mrb[0].mxu0
    %v224 = vadd.f32 %v105, %v223
    %v225 = vpop.f32.mrb[0].mxu0
    %v226 = vadd.f32 %v110, %v225
    %v227 = vpop.f32.mrb[0].mxu0
    %v228 = vadd.f32 %v110, %v227
    %229 = vmatprep.mubr.bf16.mxu0 0
    %230 = vmatmul.mubr.bf16.gmra.mrb[0].mxu0 %v137
    %v231 = vpop.f32.mrb[0].mxu0
    %v232 = vadd.f32 %v115, %v231
    %v233 = vpop.f32.mrb[0].mxu0
    %v234 = vadd.f32 %v115, %v233
    %v235 = vpop.f32.mrb[0].mxu0
    %v236 = vadd.f32 %v120, %v235
    %v237 = vpop.f32.mrb[0].mxu0
    %v238 = vadd.f32 %v120, %v237
    %239 = vdwg.mxu0
    %v240 = vmul.f32 %v222, 0.5
    %v241 = vmul.f32 %v224, 0.5
    %v242 = vmul.f32 %v226, 0.5
    %v243 = vmul.f32 %v228, 0.5
    %v244 = vmul.f32 %v232, 0.5
    %v245 = vmul.f32 %v234, 0.5
    %v246 = vmul.f32 %v236, 0.5
    %v247 = vmul.f32 %v238, 0.5
    %v248 = vtanh.pop %v240
    %v249 = vtanh.pop %v241
    %v250 = vtanh.pop %v242
    %v251 = vtanh.pop %v243
    %v252 = vtanh.pop %v244
    %v253 = vtanh.pop %v245
    %v254 = vtanh.pop %v246
    %v255 = vtanh.pop %v247
    %v256 = vmul.f32 %v248, 0.5
    %v257 = vmul.f32 %v249, 0.5
    %v258 = vmul.f32 %v250, 0.5
    %v259 = vmul.f32 %v251, 0.5
    %v260 = vmul.f32 %v252, 0.5
    %v261 = vmul.f32 %v253, 0.5
    %v262 = vmul.f32 %v254, 0.5
    %v263 = vmul.f32 %v255, 0.5
    %v264 = vadd.f32 %v256, 0.5
    %v265 = vadd.f32 %v257, 0.5
    %v266 = vadd.f32 %v258, 0.5
    %v267 = vadd.f32 %v259, 0.5
    %v268 = vadd.f32 %v260, 0.5
    %v269 = vadd.f32 %v261, 0.5
    %v270 = vadd.f32 %v262, 0.5
    %v271 = vadd.f32 %v263, 0.5
    %v272 = vpack.c.bf16 %v266, %v264
    %v273 = vpack.c.bf16 %v267, %v265
    %v274 = vpack.c.bf16 %v270, %v268
    %v275 = vpack.c.bf16 %v271, %v269
    %277 = vset.pattern.permute.xlu0 0
    %278 = vperm.xlu0 %277, %v32
    %v279 = vpop.permute.xlu0 %278
    %282 = vset.pattern.permute.xlu0 0
    %283 = vperm.xlu0 %282, %v33
    %v284 = vpop.permute.xlu0 %283
    %287 = vset.pattern.permute.xlu0 0
    %288 = vperm.xlu0 %287, %v34
    %v289 = vpop.permute.xlu0 %288
    %292 = vset.pattern.permute.xlu0 0
    %293 = vperm.xlu0 %292, %v35
    %v294 = vpop.permute.xlu0 %293
    %297 = vset.pattern.permute.xlu0 0
    %298 = vperm.xlu0 %297, %v36
    %v299 = vpop.permute.xlu0 %298
    %302 = vset.pattern.permute.xlu0 0
    %303 = vperm.xlu0 %302, %v37
    %v304 = vpop.permute.xlu0 %303
    %307 = vset.pattern.permute.xlu0 0
    %308 = vperm.xlu0 %307, %v38
    %v309 = vpop.permute.xlu0 %308
    %312 = vset.pattern.permute.xlu0 0
    %313 = vperm.xlu0 %312, %v39
    %v314 = vpop.permute.xlu0 %313
    %v324 = vunpack.c.l.b16 %v24
    %v325 = vunpack.c.l.b16 %v25
    %v326 = vunpack.c.l.b16 %v26
    %v327 = vunpack.c.l.b16 %v27
    %v328 = vunpack.c.l.b16 %v28
    %v329 = vunpack.c.l.b16 %v29
    %v330 = vunpack.c.l.b16 %v30
    %v331 = vunpack.c.l.b16 %v31
    %v332 = vpack.c.b16 %v325, %v324
    %v333 = vpack.c.b16 %v327, %v326
    %v334 = vpack.c.b16 %v329, %v328
    %v335 = vpack.c.b16 %v331, %v330
    %vm336 = vcmask 261120
    %v338 = vsel %vm336, %v332, 0
    %v341 = vsel %vm336, %v333, 0
    %v344 = vsel %vm336, %v334, 0
    %v347 = vsel %vm336, %v335, 0
    %349 = vmatprep.subr.bf16.mxu0 %v273
    %350 = vmatpush1.bf16.msra.mxu0 %v272
    %351 = vmatprep.subr.bf16.mxu0 %v275
    %352 = vmatpush1.bf16.msra.mxu0 %v274
    %353 = vmatprep.subr.bf16.mxu0 0
    %354 = vmatpush1.bf16.msra.mxu0 0
    %355 = vmatprep.subr.bf16.mxu0 0
    %356 = vmatpush1.bf16.msra.mxu0 0
    %357 = vmatprep.subr.bf16.mxu0 0
    %358 = vmatpush1.bf16.msra.mxu0 0
    %359 = vmatprep.subr.bf16.mxu0 0
    %360 = vmatpush1.bf16.msra.mxu0 0
    %361 = vmatprep.subr.bf16.mxu0 0
    %362 = vmatpush1.bf16.msra.mxu0 0
    %363 = vmatprep.subr.bf16.mxu0 0
    %364 = vmatpush1.bf16.msra.mxu0 0
    %365 = vmatprep.subr.bf16.mxu0 0
    %366 = vmatpush1.bf16.msra.mxu0 0
    %367 = vmatprep.subr.bf16.mxu0 0
    %368 = vmatpush1.bf16.msra.mxu0 0
    %369 = vmatprep.subr.bf16.mxu0 0
    %370 = vmatpush1.bf16.msra.mxu0 0
    %371 = vmatprep.subr.bf16.mxu0 0
    %372 = vmatpush1.bf16.msra.mxu0 0
    %373 = vmatprep.subr.bf16.mxu0 0
    %374 = vmatpush1.bf16.msra.mxu0 0
    %375 = vmatprep.subr.bf16.mxu0 0
    %376 = vmatpush1.bf16.msra.mxu0 0
    %377 = vmatprep.subr.bf16.mxu0 0
    %378 = vmatpush1.bf16.msra.mxu0 0
    %379 = vmatprep.subr.bf16.mxu0 0
    %380 = vmatpush1.bf16.msra.mxu0 0
    %381 = vmatprep.mubr.bf16.mxu0 0
    %382 = vmatmul.mubr.bf16.gmra.mrb[0].mxu0 %v338
    %v383 = vpop.f32.mrb[0].mxu0
    %v384 = vadd.f32 %v279, %v383
    %v385 = vpop.f32.mrb[0].mxu0
    %v386 = vadd.f32 %v279, %v385
    %v387 = vpop.f32.mrb[0].mxu0
    %v388 = vadd.f32 %v284, %v387
    %v389 = vpop.f32.mrb[0].mxu0
    %v390 = vadd.f32 %v284, %v389
    %391 = vmatprep.mubr.bf16.mxu0 0
    %392 = vmatmul.mubr.bf16.gmra.mrb[0].mxu0 %v341
    %v393 = vpop.f32.mrb[0].mxu0
    %v394 = vadd.f32 %v289, %v393
    %v395 = vpop.f32.mrb[0].mxu0
    %v396 = vadd.f32 %v289, %v395
    %v397 = vpop.f32.mrb[0].mxu0
    %v398 = vadd.f32 %v294, %v397
    %v399 = vpop.f32.mrb[0].mxu0
    %v400 = vadd.f32 %v294, %v399
    %401 = vmatprep.mubr.bf16.mxu0 0
    %402 = vmatmul.mubr.bf16.gmra.mrb[0].mxu0 %v344
    %v403 = vpop.f32.mrb[0].mxu0
    %v404 = vadd.f32 %v299, %v403
    %v405 = vpop.f32.mrb[0].mxu0
    %v406 = vadd.f32 %v299, %v405
    %v407 = vpop.f32.mrb[0].mxu0
    %v408 = vadd.f32 %v304, %v407
    %v409 = vpop.f32.mrb[0].mxu0
    %v410 = vadd.f32 %v304, %v409
    %411 = vmatprep.mubr.bf16.mxu0 0
    %412 = vmatmul.mubr.bf16.gmra.mrb[0].mxu0 %v347
    %v413 = vpop.f32.mrb[0].mxu0
    %v414 = vadd.f32 %v309, %v413
    %v415 = vpop.f32.mrb[0].mxu0
    %v416 = vadd.f32 %v309, %v415
    %v417 = vpop.f32.mrb[0].mxu0
    %v418 = vadd.f32 %v314, %v417
    %v419 = vpop.f32.mrb[0].mxu0
    %v420 = vadd.f32 %v314, %v419
    %421 = vdwg.mxu0
    %v422 = vmul.f32 %v384, 0.5
    %v423 = vmul.f32 %v386, 0.5
    %v424 = vmul.f32 %v388, 0.5
    %v425 = vmul.f32 %v390, 0.5
    %v426 = vmul.f32 %v394, 0.5
    %v427 = vmul.f32 %v396, 0.5
    %v428 = vmul.f32 %v398, 0.5
    %v429 = vmul.f32 %v400, 0.5
    %v430 = vmul.f32 %v404, 0.5
    %v431 = vmul.f32 %v406, 0.5
    %v432 = vmul.f32 %v408, 0.5
    %v433 = vmul.f32 %v410, 0.5
    %v434 = vmul.f32 %v414, 0.5
    %v435 = vmul.f32 %v416, 0.5
    %v436 = vmul.f32 %v418, 0.5
    %v437 = vmul.f32 %v420, 0.5
    %v438 = vtanh.pop %v422
    %v439 = vtanh.pop %v423
    %v440 = vtanh.pop %v424
    %v441 = vtanh.pop %v425
    %v442 = vtanh.pop %v426
    %v443 = vtanh.pop %v427
    %v444 = vtanh.pop %v428
    %v445 = vtanh.pop %v429
    %v446 = vtanh.pop %v430
    %v447 = vtanh.pop %v431
    %v448 = vtanh.pop %v432
    %v449 = vtanh.pop %v433
    %v450 = vtanh.pop %v434
    %v451 = vtanh.pop %v435
    %v452 = vtanh.pop %v436
    %v453 = vtanh.pop %v437
    %v454 = vmul.f32 %v438, 0.5
    %v455 = vmul.f32 %v439, 0.5
    %v456 = vmul.f32 %v440, 0.5
    %v457 = vmul.f32 %v441, 0.5
    %v458 = vmul.f32 %v442, 0.5
    %v459 = vmul.f32 %v443, 0.5
    %v460 = vmul.f32 %v444, 0.5
    %v461 = vmul.f32 %v445, 0.5
    %v462 = vmul.f32 %v446, 0.5
    %v463 = vmul.f32 %v447, 0.5
    %v464 = vmul.f32 %v448, 0.5
    %v465 = vmul.f32 %v449, 0.5
    %v466 = vmul.f32 %v450, 0.5
    %v467 = vmul.f32 %v451, 0.5
    %v468 = vmul.f32 %v452, 0.5
    %v469 = vmul.f32 %v453, 0.5
    %v470 = vadd.f32 %v454, 0.5
    %v471 = vadd.f32 %v455, 0.5
    %v472 = vadd.f32 %v456, 0.5
    %v473 = vadd.f32 %v457, 0.5
    %v474 = vadd.f32 %v458, 0.5
    %v475 = vadd.f32 %v459, 0.5
    %v476 = vadd.f32 %v460, 0.5
    %v477 = vadd.f32 %v461, 0.5
    %v478 = vadd.f32 %v462, 0.5
    %v479 = vadd.f32 %v463, 0.5
    %v480 = vadd.f32 %v464, 0.5
    %v481 = vadd.f32 %v465, 0.5
    %v482 = vadd.f32 %v466, 0.5
    %v483 = vadd.f32 %v467, 0.5
    %v484 = vadd.f32 %v468, 0.5
    %v485 = vadd.f32 %v469, 0.5
    %v486 = vpack.c.bf16 %v472, %v470
    %v487 = vpack.c.bf16 %v473, %v471
    %v488 = vpack.c.bf16 %v476, %v474
    %v489 = vpack.c.bf16 %v477, %v475
    %v490 = vpack.c.bf16 %v480, %v478
    %v491 = vpack.c.bf16 %v481, %v479
    %v492 = vpack.c.bf16 %v484, %v482
    %v493 = vpack.c.bf16 %v485, %v483
    %495 = vset.pattern.permute.xlu0 0
    %496 = vperm.xlu0 %495, %v44
    %v497 = vpop.permute.xlu0 %496
    %500 = vset.pattern.permute.xlu0 0
    %501 = vperm.xlu0 %500, %v45
    %v502 = vpop.permute.xlu0 %501
    %505 = vset.pattern.permute.xlu0 0
    %506 = vperm.xlu0 %505, %v46
    %v507 = vpop.permute.xlu0 %506
    %510 = vset.pattern.permute.xlu0 0
    %511 = vperm.xlu0 %510, %v47
    %v512 = vpop.permute.xlu0 %511
    %v518 = vunpack.c.l.b16 %v40
    %v519 = vunpack.c.l.b16 %v41
    %v520 = vunpack.c.l.b16 %v42
    %v521 = vunpack.c.l.b16 %v43
    %v522 = vpack.c.b16 %v519, %v518
    %v523 = vpack.c.b16 %v521, %v520
    %vm524 = vcmask 523264
    %v526 = vsel %vm524, %v522, 0
    %v529 = vsel %vm524, %v523, 0
    %531 = vmatprep.subr.bf16.mxu0 %v487
    %532 = vmatpush1.bf16.msra.mxu0 %v486
    %533 = vmatprep.subr.bf16.mxu0 %v489
    %534 = vmatpush1.bf16.msra.mxu0 %v488
    %535 = vmatprep.subr.bf16.mxu0 %v491
    %536 = vmatpush1.bf16.msra.mxu0 %v490
    %537 = vmatprep.subr.bf16.mxu0 %v493
    %538 = vmatpush1.bf16.msra.mxu0 %v492
    %539 = vmatprep.subr.bf16.mxu0 0
    %540 = vmatpush1.bf16.msra.mxu0 0
    %541 = vmatprep.subr.bf16.mxu0 0
    %542 = vmatpush1.bf16.msra.mxu0 0
    %543 = vmatprep.subr.bf16.mxu0 0
    %544 = vmatpush1.bf16.msra.mxu0 0
    %545 = vmatprep.subr.bf16.mxu0 0
    %546 = vmatpush1.bf16.msra.mxu0 0
    %547 = vmatprep.subr.bf16.mxu0 0
    %548 = vmatpush1.bf16.msra.mxu0 0
    %549 = vmatprep.subr.bf16.mxu0 0
    %550 = vmatpush1.bf16.msra.mxu0 0
    %551 = vmatprep.subr.bf16.mxu0 0
    %552 = vmatpush1.bf16.msra.mxu0 0
    %553 = vmatprep.subr.bf16.mxu0 0
    %554 = vmatpush1.bf16.msra.mxu0 0
    %555 = vmatprep.subr.bf16.mxu0 0
    %556 = vmatpush1.bf16.msra.mxu0 0
    %557 = vmatprep.subr.bf16.mxu0 0
    %558 = vmatpush1.bf16.msra.mxu0 0
    %559 = vmatprep.subr.bf16.mxu0 0
    %560 = vmatpush1.bf16.msra.mxu0 0
    %561 = vmatprep.subr.bf16.mxu0 0
    %562 = vmatpush1.bf16.msra.mxu0 0
    %563 = vmatprep.mubr.bf16.mxu0 0
    %564 = vmatmul.mubr.bf16.gmra.mrb[0].mxu0 %v526
    %v565 = vpop.f32.mrb[0].mxu0
    %v566 = vadd.f32 %v497, %v565
    %v567 = vpop.f32.mrb[0].mxu0
    %v568 = vadd.f32 %v497, %v567
    %v569 = vpop.f32.mrb[0].mxu0
    %v570 = vadd.f32 %v502, %v569
    %v571 = vpop.f32.mrb[0].mxu0
    %v572 = vadd.f32 %v502, %v571
    %573 = vmatprep.mubr.bf16.mxu0 0
    %574 = vmatmul.mubr.bf16.gmra.mrb[0].mxu0 %v529
    %v575 = vpop.f32.mrb[0].mxu0
    %v576 = vadd.f32 %v507, %v575
    %v577 = vpop.f32.mrb[0].mxu0
    %v578 = vadd.f32 %v507, %v577
    %v579 = vpop.f32.mrb[0].mxu0
    %v580 = vadd.f32 %v512, %v579
    %v581 = vpop.f32.mrb[0].mxu0
    %v582 = vadd.f32 %v512, %v581
    %583 = vdwg.mxu0
    %v584 = vmul.f32 %v566, 0.5
    %v585 = vmul.f32 %v568, 0.5
    %v586 = vmul.f32 %v570, 0.5
    %v587 = vmul.f32 %v572, 0.5
    %v588 = vmul.f32 %v576, 0.5
    %v589 = vmul.f32 %v578, 0.5
    %v590 = vmul.f32 %v580, 0.5
    %v591 = vmul.f32 %v582, 0.5
    %v592 = vtanh.pop %v584
    %v593 = vtanh.pop %v585
    %v594 = vtanh.pop %v586
    %v595 = vtanh.pop %v587
    %v596 = vtanh.pop %v588
    %v597 = vtanh.pop %v589
    %v598 = vtanh.pop %v590
    %v599 = vtanh.pop %v591
    %v600 = vmul.f32 %v592, 0.5
    %v601 = vmul.f32 %v593, 0.5
    %v602 = vmul.f32 %v594, 0.5
    %v603 = vmul.f32 %v595, 0.5
    %v604 = vmul.f32 %v596, 0.5
    %v605 = vmul.f32 %v597, 0.5
    %v606 = vmul.f32 %v598, 0.5
    %v607 = vmul.f32 %v599, 0.5
    %v608 = vadd.f32 %v600, 0.5
    %v609 = vadd.f32 %v601, 0.5
    %v610 = vadd.f32 %v602, 0.5
    %v611 = vadd.f32 %v603, 0.5
    %v612 = vadd.f32 %v604, 0.5
    %v613 = vadd.f32 %v605, 0.5
    %v614 = vadd.f32 %v606, 0.5
    %v615 = vadd.f32 %v607, 0.5
    %v616 = vpack.c.bf16 %v610, %v608
    %v617 = vpack.c.bf16 %v611, %v609
    %v618 = vpack.c.bf16 %v614, %v612
    %v619 = vpack.c.bf16 %v615, %v613
    %621 = vset.pattern.permute.xlu0 0
    %622 = vperm.xlu0 %621, %v50
    %v623 = vpop.permute.xlu0 %622
    %626 = vset.pattern.permute.xlu0 0
    %627 = vperm.xlu0 %626, %v51
    %v628 = vpop.permute.xlu0 %627
    %v632 = vunpack.c.l.b16 %v48
    %v633 = vunpack.c.l.b16 %v49
    %v634 = vpack.c.b16 %v633, %v632
    %v636 = vsel %vm336, %v634, 0
    %638 = vmatprep.subr.bf16.mxu0 %v617
    %639 = vmatpush1.bf16.msra.mxu0 %v616
    %640 = vmatprep.subr.bf16.mxu0 %v619
    %641 = vmatpush1.bf16.msra.mxu0 %v618
    %642 = vmatprep.subr.bf16.mxu0 0
    %643 = vmatpush1.bf16.msra.mxu0 0
    %644 = vmatprep.subr.bf16.mxu0 0
    %645 = vmatpush1.bf16.msra.mxu0 0
    %646 = vmatprep.subr.bf16.mxu0 0
    %647 = vmatpush1.bf16.msra.mxu0 0
    %648 = vmatprep.subr.bf16.mxu0 0
    %649 = vmatpush1.bf16.msra.mxu0 0
    %650 = vmatprep.subr.bf16.mxu0 0
    %651 = vmatpush1.bf16.msra.mxu0 0
    %652 = vmatprep.subr.bf16.mxu0 0
    %653 = vmatpush1.bf16.msra.mxu0 0
    %654 = vmatprep.subr.bf16.mxu0 0
    %655 = vmatpush1.bf16.msra.mxu0 0
    %656 = vmatprep.subr.bf16.mxu0 0
    %657 = vmatpush1.bf16.msra.mxu0 0
    %658 = vmatprep.subr.bf16.mxu0 0
    %659 = vmatpush1.bf16.msra.mxu0 0
    %660 = vmatprep.subr.bf16.mxu0 0
    %661 = vmatpush1.bf16.msra.mxu0 0
    %662 = vmatprep.subr.bf16.mxu0 0
    %663 = vmatpush1.bf16.msra.mxu0 0
    %664 = vmatprep.subr.bf16.mxu0 0
    %665 = vmatpush1.bf16.msra.mxu0 0
    %666 = vmatprep.subr.bf16.mxu0 0
    %667 = vmatpush1.bf16.msra.mxu0 0
    %668 = vmatprep.subr.bf16.mxu0 0
    %669 = vmatpush1.bf16.msra.mxu0 0
    %670 = vmatprep.mubr.bf16.mxu0 0
    %671 = vmatmul.mubr.bf16.gmra.mrb[0].mxu0 %v636
    %v672 = vpop.f32.mrb[0].mxu0
    %v673 = vadd.f32 %v623, %v672
    %v674 = vpop.f32.mrb[0].mxu0
    %v675 = vadd.f32 %v623, %v674
    %v676 = vpop.f32.mrb[0].mxu0
    %v677 = vadd.f32 %v628, %v676
    %v678 = vpop.f32.mrb[0].mxu0
    %v679 = vadd.f32 %v628, %v678
    %680 = vdwg.mxu0
    %v681 = vmul.f32 %v673, 0.5
    %v682 = vmul.f32 %v675, 0.5
    %v683 = vmul.f32 %v677, 0.5
    %v684 = vmul.f32 %v679, 0.5
    %v685 = vtanh.pop %v681
    %v686 = vtanh.pop %v682
    %v687 = vtanh.pop %v683
    %v688 = vtanh.pop %v684
    %v689 = vmul.f32 %v685, 0.5
    %v690 = vmul.f32 %v686, 0.5
    %v691 = vmul.f32 %v687, 0.5
    %v692 = vmul.f32 %v688, 0.5
    %v693 = vadd.f32 %v689, 0.5
    %v694 = vadd.f32 %v690, 0.5
    %v695 = vadd.f32 %v691, 0.5
    %v696 = vadd.f32 %v692, 0.5
    %v697 = vpack.c.bf16 %v695, %v693
    %v698 = vpack.c.bf16 %v696, %v694
    %700 = vset.pattern.permute.xlu0 0
    %701 = vperm.xlu0 %700, %v53
    %v702 = vpop.permute.xlu0 %701
    %vm704 = vcmask 130048
    %v706 = vsel %vm704, %v52, 0
    %708 = vmatprep.subr.bf16.mxu0 %v698
    %709 = vmatpush1.bf16.msra.mxu0 %v697
    %710 = vmatprep.subr.bf16.mxu0 0
    %711 = vmatpush1.bf16.msra.mxu0 0
    %712 = vmatprep.subr.bf16.mxu0 0
    %713 = vmatpush1.bf16.msra.mxu0 0
    %714 = vmatprep.subr.bf16.mxu0 0
    %715 = vmatpush1.bf16.msra.mxu0 0
    %716 = vmatprep.subr.bf16.mxu0 0
    %717 = vmatpush1.bf16.msra.mxu0 0
    %718 = vmatprep.subr.bf16.mxu0 0
    %719 = vmatpush1.bf16.msra.mxu0 0
    %720 = vmatprep.subr.bf16.mxu0 0
    %721 = vmatpush1.bf16.msra.mxu0 0
    %722 = vmatprep.subr.bf16.mxu0 0
    %723 = vmatpush1.bf16.msra.mxu0 0
    %724 = vmatprep.subr.bf16.mxu0 0
    %725 = vmatpush1.bf16.msra.mxu0 0
    %726 = vmatprep.subr.bf16.mxu0 0
    %727 = vmatpush1.bf16.msra.mxu0 0
    %728 = vmatprep.subr.bf16.mxu0 0
    %729 = vmatpush1.bf16.msra.mxu0 0
    %730 = vmatprep.subr.bf16.mxu0 0
    %731 = vmatpush1.bf16.msra.mxu0 0
    %732 = vmatprep.subr.bf16.mxu0 0
    %733 = vmatpush1.bf16.msra.mxu0 0
    %734 = vmatprep.subr.bf16.mxu0 0
    %735 = vmatpush1.bf16.msra.mxu0 0
    %736 = vmatprep.subr.bf16.mxu0 0
    %737 = vmatpush1.bf16.msra.mxu0 0
    %738 = vmatprep.subr.bf16.mxu0 0
    %739 = vmatpush1.bf16.msra.mxu0 0
    %740 = vmatprep.mubr.bf16.mxu0 0
    %741 = vmatmul.mubr.bf16.gmra.mrb[0].mxu0 %v706
    %v742 = vpop.f32.mrb[0].mxu0
    %v743 = vadd.f32 %v702, %v742
    %v744 = vpop.f32.mrb[0].mxu0
    %v745 = vadd.f32 %v702, %v744
    %v746 = vpop.f32.mrb[0].mxu0
    %v747 = vpop.f32.mrb[0].mxu0
    %748 = vdwg.mxu0
    %749 = vst [vmem:[#allocation2] sm:$0xff] %v743
    %750 = vst [vmem:[#allocation2 + $0x8] sm:$0xff] %v745
    // Predicated region
    $region14: #{tpu_custom_call.1} parent=1 // pred_check
      _
    $region15: #{tpu_custom_call.1} parent=1 // pred_check_branch
      %752 = sbr.rel (0) target = $region17
    $region16: #{tpu_custom_call.1} parent=1 // pred_region
      %s754 = ssub.s32 256, 256
      %755 = vsyncadd [#allocation3], %s754
      %s757 = sshll.u32 [#allocation2], 4
      %s758 = int_to_ptr.vmem [resolvable:$true] %s757
      %760 = dma.vmem_to_hbm [thread:$0]  %s758, 256, %s3, [#allocation3]
    $region17: #{tpu_custom_call.1} parent=1 // pred_fallthru
      _
    // Predicated region
    $region18: #{tpu_custom_call.1} parent=1 // pred_check
      _
    $region19: #{tpu_custom_call.1} parent=1 // pred_check_branch
      %762 = sbr.rel (0) target = $region21
    $region20: #{tpu_custom_call.1} parent=1 // pred_region
      %763 = dma.done [#allocation3], 256
    $region21: #{tpu_custom_call.1} parent=1 // pred_fallthru
      _
    %764 = vsyncpa [#allocation3], 1

</llo_original>
